<compile_context>
chip_gen: v7x
topology: tpu7x:2x2x1
jax: 0.10.0
libtpu: 0.0.40
codegen_flags: <defaults>
</compile_context>

<pallas_src>
import jax
import jax.numpy as jnp
from jax.experimental import pallas as pl
from jax.experimental.pallas import tpu as pltpu

_LANE = 128  # TPU lane width


def _cdiv(a, b):
    return (a + b - 1) // b


def _round_up(a, m):
    return ((a + m - 1) // m) * m


def _default_compute_dtype():
    """bf16 on chips with a bf16 VPU/EUP/MXU path (v6e, v7x); f32 elsewhere."""
    try:
        kind = jax.devices()[0].device_kind.lower()
    except Exception:
        return jnp.float32
    if ("v6" in kind) or ("v7" in kind) or ("7x" in kind):
        return jnp.bfloat16
    return jnp.float32


def _make_mlp_kernel(num_linears, compute_dtype):
    """Kernel over one batch tile (batch on lanes): full MLP on MXU/VPU/EUP."""

    def kernel(*refs):
        # refs = (xT, w0, b0, w1, b1, ..., outT)
        x_ref = refs[0]
        wb_refs = refs[1:1 + 2 * num_linears]
        o_ref = refs[-1]

        h = x_ref[...].astype(compute_dtype)  # (d_in, tm): features on sublanes, batch on lanes
        for l in range(num_linears):
            w = wb_refs[2 * l][...].astype(compute_dtype)  # (out, in) — PyTorch layout
            b = wb_refs[2 * l + 1][...]                    # (out, 1)  — f32, broadcast on lanes
            acc = jnp.dot(w, h, preferred_element_type=jnp.float32) + b
            if l < num_linears - 1:
                # jnp.tanh lowers to the EUP transcendental unit (its own VLIW slot).
                h = jnp.tanh(acc.astype(compute_dtype))
            else:
                h = acc  # no tanh after the final linear
        o_ref[...] = h.astype(o_ref.dtype)

    return kernel


def pinn_forward_tl(x_t, lb, ub, weights, biases, *, tm=8192, compute_dtype=None):
    """NN forward with batch-on-lanes layout (no wrapper-side transposes/pads).

    Args:
      x_t:     [d_in, N] inputs (transposed layout).
      lb, ub:  [1, d_in] lower / upper bounds (requires ub > lb elementwise).
      weights: list of PyTorch-layout weights, each [out, in].
      biases:  list of biases, each [out].
      tm:      max batch-tile size (rounded to a multiple of 128 lanes).
      compute_dtype: dtype for matmul inputs / tanh (None -> chip-aware default).
    Returns:
      [d_out, N] outputs (transposed layout), dtype of x_t.
    """
    d_in, N = x_t.shape
    num_linears = len(weights)
    d_out = weights[-1].shape[0]
    if compute_dtype is None:
        compute_dtype = _default_compute_dtype()

    # ---- Guard: normalization fold divides by (ub - lb). Checked when concrete.
    try:
        ok = bool(jnp.all(ub > lb))
    except Exception:   # traced lb/ub: cannot check statically
        ok = True
    if not ok:
        raise ValueError("NN requires ub > lb elementwise")

    # ---- Fold normalization 2*(x-lb)/(ub-lb)-1 into the first linear layer.
    scale = (2.0 / (ub - lb)).reshape(d_in)               # (d_in,)
    shift = (-2.0 * lb / (ub - lb) - 1.0).reshape(d_in)   # (d_in,)
    w0 = weights[0] * scale[None, :]                      # (d0, d_in)
    b0 = biases[0] + weights[0] @ shift                   # (d0,)
    ws = [w0] + list(weights[1:])
    bs = [b0.reshape(-1, 1)] + [b.reshape(-1, 1) for b in biases[1:]]

    # ---- Batch tiling: balanced, lane-aligned, and >= 2 grid steps for large N
    # so the "parallel" batch axis can shard across both TensorCores on v7x.
    n_tiles = max(1, _cdiv(N, tm))
    tm_eff = max(_LANE, _round_up(_cdiv(N, n_tiles), _LANE))
    tm_eff = max(_LANE, min(tm_eff, _round_up(_cdiv(N, 2), _LANE)))
    grid = _cdiv(N, tm_eff)

    kernel = _make_mlp_kernel(num_linears, compute_dtype)

    def const_spec(shape):
        # Block index never changes -> weights/biases stay resident across the grid.
        return pl.BlockSpec(shape, lambda i: (0, 0))

    in_specs = [pl.BlockSpec((d_in, tm_eff), lambda i: (0, i))]  # x tile
    args = [x_t]
    for w, b in zip(ws, bs):
        in_specs.append(const_spec(w.shape))
        in_specs.append(const_spec(b.shape))
        args.append(w)
        args.append(b)

    out_t = pl.pallas_call(
        kernel,
        out_shape=jax.ShapeDtypeStruct((d_out, N), x_t.dtype),
        grid_spec=pltpu.PrefetchScalarGridSpec(
            num_scalar_prefetch=0,
            grid=(grid,),
            in_specs=in_specs,
            out_specs=pl.BlockSpec((d_out, tm_eff), lambda i: (0, i)),
        ),
        compiler_params=pltpu.CompilerParams(
            dimension_semantics=("parallel",)),
    )(*args)
    return out_t


def pinn_forward(x, lb, ub, weights, biases, *, tm=8192, compute_dtype=None,
                 jax_fallback_below=0):
    """PyTorch-layout entry point: x is [N, d_in], returns [N, d_out].

    Note: the transposes to/from the lane-dense [D, N] kernel layout make an HBM
    copy of x and of the output; callers that can produce/consume the [D, N]
    layout directly should use `pinn_forward_tl` instead.  `jax_fallback_below`
    (if > 0) routes tiny batches to the pure-JAX path where launch/layout
    overheads would dominate.
    """
    N = x.shape[0]
    if jax_fallback_below and N < jax_fallback_below:
        return _reference_forward(x, lb, ub, weights, biases)
    out_t = pinn_forward_tl(x.T, lb, ub, weights, biases, tm=tm,
                            compute_dtype=compute_dtype)
    return out_t.T


def _reference_forward(x, lb, ub, weights, biases):
    """Pure-JAX reference (PyTorch nn.Linear convention: h @ W.T + b)."""
    h = 2.0 * (x - lb) / (ub - lb) - 1.0
    n = len(weights)
    for l, (w, b) in enumerate(zip(weights, biases)):
        h = h @ w.T + b
        if l < n - 1:
            h = jnp.tanh(h)
    return h


def _init_params(layers, key):
    """Deterministic init of the Linear stack built by NN.__init__.

    Linear dims: (D0 -> D0), then (layers[i] -> layers[i+1]) for i in 0..n-2.
    Weights returned in PyTorch layout [out, in], biases [out].
    """
    dims = [(layers[0], layers[0])]
    for i in range(len(layers) - 1):
        dims.append((layers[i], layers[i + 1]))

    weights, biases = [], []
    for (fan_in, fan_out) in dims:
        key, kw, kb = jax.random.split(key, 3)
        bound = float(fan_in) ** -0.5  # matches nn.Linear default (uniform)
        w = jax.random.uniform(kw, (fan_out, fan_in), jnp.float32, -bound, bound)
        b = jax.random.uniform(kb, (fan_out,), jnp.float32, -bound, bound)
        weights.append(w)
        biases.append(b)
    return weights, biases


if __name__ == "__main__":
    layers = [4, 32, 32, 2]   # input dim 4, two hidden layers of 32, output dim 2
    N = 64                     # batch ("None" dim in the PyTorch docstring)

    key = jax.random.PRNGKey(0)
    key, kx = jax.random.split(key)

    lb = jnp.full((1, layers[0]), -1.0, dtype=jnp.float32)   # lower bounds
    ub = jnp.full((1, layers[0]), 2.0, dtype=jnp.float32)    # upper bounds
    x = jax.random.uniform(kx, (N, layers[0]), jnp.float32,
                           minval=-1.0, maxval=2.0)

    weights, biases = _init_params(layers, key)
    ref = _reference_forward(x, lb, ub, weights, biases)

    # 1) Exact-semantics check in f32 (valid on every TPU generation).
    out_f32 = pinn_forward(x, lb, ub, weights, biases, compute_dtype=jnp.float32)
    out_f32 = jax.block_until_ready(out_f32)
    assert out_f32.shape == (N, layers[-1])
    assert jnp.allclose(out_f32, ref, rtol=1e-5, atol=2e-5), "f32 mismatch vs reference"

    # 2) Chip-aware default dtype (bf16 on v6e/v7x, f32 on v5e/older); looser tol.
    out = pinn_forward(x, lb, ub, weights, biases)
    out = jax.block_until_ready(out)
    assert out.shape == (N, layers[-1])
    assert jnp.allclose(out.astype(jnp.float32), ref, rtol=1e-1, atol=1e-1), \
        "default-dtype mismatch vs reference"

    print("KERNEL_OK")
</pallas_src>

<mosaic_0001>
module attributes {stable_mosaic.version = 11 : i64} {
  func.func @kernel(%arg0: i32, %arg1: memref<4x128xf32, #tpu.memory_space<vmem>>, %arg2: memref<4x4xf32, #tpu.memory_space<vmem>>, %arg3: memref<4x1xf32, #tpu.memory_space<vmem>>, %arg4: memref<32x4xf32, #tpu.memory_space<vmem>>, %arg5: memref<32x1xf32, #tpu.memory_space<vmem>>, %arg6: memref<32x32xf32, #tpu.memory_space<vmem>>, %arg7: memref<32x1xf32, #tpu.memory_space<vmem>>, %arg8: memref<2x32xf32, #tpu.memory_space<vmem>>, %arg9: memref<2x1xf32, #tpu.memory_space<vmem>>, %arg10: memref<2x128xf32, #tpu.memory_space<vmem>>) attributes {dimension_semantics = [#tpu.dimension_semantics<parallel>], iteration_bounds = array<i64: 1>, scalar_prefetch = 0 : i64, scratch_operands = 0 : i64, tpu.core_type = #tpu.core_type<tc>, window_params = [{transform_indices = @transform_0, window_bounds = array<i64: 4, 128>}, {pipeline_mode = #tpu.pipeline_mode<synchronous>, transform_indices = @transform_1, window_bounds = array<i64: 4, 4>}, {pipeline_mode = #tpu.pipeline_mode<synchronous>, transform_indices = @transform_2, window_bounds = array<i64: 4, 1>}, {pipeline_mode = #tpu.pipeline_mode<synchronous>, transform_indices = @transform_3, window_bounds = array<i64: 32, 4>}, {pipeline_mode = #tpu.pipeline_mode<synchronous>, transform_indices = @transform_4, window_bounds = array<i64: 32, 1>}, {pipeline_mode = #tpu.pipeline_mode<synchronous>, transform_indices = @transform_5, window_bounds = array<i64: 32, 32>}, {pipeline_mode = #tpu.pipeline_mode<synchronous>, transform_indices = @transform_6, window_bounds = array<i64: 32, 1>}, {pipeline_mode = #tpu.pipeline_mode<synchronous>, transform_indices = @transform_7, window_bounds = array<i64: 2, 32>}, {pipeline_mode = #tpu.pipeline_mode<synchronous>, transform_indices = @transform_8, window_bounds = array<i64: 2, 1>}, {transform_indices = @transform_9, window_bounds = array<i64: 2, 128>}]} {
    %c0 = arith.constant 0 : index
    %c0_0 = arith.constant 0 : index
    %0 = vector.load %arg1[%c0, %c0_0] : memref<4x128xf32, #tpu.memory_space<vmem>>, vector<4x128xf32>
    %c0_1 = arith.constant 0 : index
    %c0_2 = arith.constant 0 : index
    %1 = vector.load %arg2[%c0_1, %c0_2] : memref<4x4xf32, #tpu.memory_space<vmem>>, vector<4x4xf32>
    %c0_3 = arith.constant 0 : index
    %c0_4 = arith.constant 0 : index
    %2 = vector.load %arg3[%c0_3, %c0_4] : memref<4x1xf32, #tpu.memory_space<vmem>>, vector<4x1xf32>
    %cst = arith.constant dense<0.000000e+00> : vector<4x128xf32>
    %3 = tpu.matmul %1, %0, %cst {dimension_numbers = #tpu.dot_dimension_numbers<[1], [0], [0], [1], [0, 0, 1, 1], [], []>} : vector<4x4xf32>, vector<4x128xf32>, vector<4x128xf32> -> vector<4x128xf32>
    %4 = vector.broadcast %2 : vector<4x1xf32> to vector<4x128xf32>
    %5 = arith.addf %3, %4 : vector<4x128xf32>
    %6 = math.tanh %5 : vector<4x128xf32>
    %c0_5 = arith.constant 0 : index
    %c0_6 = arith.constant 0 : index
    %7 = vector.load %arg4[%c0_5, %c0_6] : memref<32x4xf32, #tpu.memory_space<vmem>>, vector<32x4xf32>
    %c0_7 = arith.constant 0 : index
    %c0_8 = arith.constant 0 : index
    %8 = vector.load %arg5[%c0_7, %c0_8] : memref<32x1xf32, #tpu.memory_space<vmem>>, vector<32x1xf32>
    %cst_9 = arith.constant dense<0.000000e+00> : vector<32x128xf32>
    %9 = tpu.matmul %7, %6, %cst_9 {dimension_numbers = #tpu.dot_dimension_numbers<[1], [0], [0], [1], [0, 0, 1, 1], [], []>} : vector<32x4xf32>, vector<4x128xf32>, vector<32x128xf32> -> vector<32x128xf32>
    %10 = vector.broadcast %8 : vector<32x1xf32> to vector<32x128xf32>
    %11 = arith.addf %9, %10 : vector<32x128xf32>
    %12 = math.tanh %11 : vector<32x128xf32>
    %c0_10 = arith.constant 0 : index
    %c0_11 = arith.constant 0 : index
    %13 = vector.load %arg6[%c0_10, %c0_11] : memref<32x32xf32, #tpu.memory_space<vmem>>, vector<32x32xf32>
    %c0_12 = arith.constant 0 : index
    %c0_13 = arith.constant 0 : index
    %14 = vector.load %arg7[%c0_12, %c0_13] : memref<32x1xf32, #tpu.memory_space<vmem>>, vector<32x1xf32>
    %cst_14 = arith.constant dense<0.000000e+00> : vector<32x128xf32>
    %15 = tpu.matmul %13, %12, %cst_14 {dimension_numbers = #tpu.dot_dimension_numbers<[1], [0], [0], [1], [0, 0, 1, 1], [], []>} : vector<32x32xf32>, vector<32x128xf32>, vector<32x128xf32> -> vector<32x128xf32>
    %16 = vector.broadcast %14 : vector<32x1xf32> to vector<32x128xf32>
    %17 = arith.addf %15, %16 : vector<32x128xf32>
    %18 = math.tanh %17 : vector<32x128xf32>
    %c0_15 = arith.constant 0 : index
    %c0_16 = arith.constant 0 : index
    %19 = vector.load %arg8[%c0_15, %c0_16] : memref<2x32xf32, #tpu.memory_space<vmem>>, vector<2x32xf32>
    %c0_17 = arith.constant 0 : index
    %c0_18 = arith.constant 0 : index
    %20 = vector.load %arg9[%c0_17, %c0_18] : memref<2x1xf32, #tpu.memory_space<vmem>>, vector<2x1xf32>
    %cst_19 = arith.constant dense<0.000000e+00> : vector<2x128xf32>
    %21 = tpu.matmul %19, %18, %cst_19 {dimension_numbers = #tpu.dot_dimension_numbers<[1], [0], [0], [1], [0, 0, 1, 1], [], []>} : vector<2x32xf32>, vector<32x128xf32>, vector<2x128xf32> -> vector<2x128xf32>
    %22 = vector.broadcast %20 : vector<2x1xf32> to vector<2x128xf32>
    %23 = arith.addf %21, %22 : vector<2x128xf32>
    %c0_20 = arith.constant 0 : index
    %c0_21 = arith.constant 0 : index
    %24 = vector.load %arg10[%c0_20, %c0_21] : memref<2x128xf32, #tpu.memory_space<vmem>>, vector<2x128xf32>
    tpu.vector_store %arg10[%c0_20, %c0_21], %23 {strides = array<i32>} : memref<2x128xf32, #tpu.memory_space<vmem>>, vector<2x128xf32>,
    return
  }
  func.func @transform_0(%arg0: i32) -> (i32, i32) {
    %c0_i32 = arith.constant 0 : i32
    %c0_i32_0 = arith.constant 0 : i32
    return %c0_i32, %arg0 : i32, i32
  }
  func.func @transform_1(%arg0: i32) -> (i32, i32) {
    %c0_i32 = arith.constant 0 : i32
    %c0_i32_0 = arith.constant 0 : i32
    %c0_i32_1 = arith.constant 0 : i32
    return %c0_i32, %c0_i32_0 : i32, i32
  }
  func.func @transform_2(%arg0: i32) -> (i32, i32) {
    %c0_i32 = arith.constant 0 : i32
    %c0_i32_0 = arith.constant 0 : i32
    %c0_i32_1 = arith.constant 0 : i32
    return %c0_i32, %c0_i32_0 : i32, i32
  }
  func.func @transform_3(%arg0: i32) -> (i32, i32) {
    %c0_i32 = arith.constant 0 : i32
    %c0_i32_0 = arith.constant 0 : i32
    %c0_i32_1 = arith.constant 0 : i32
    return %c0_i32, %c0_i32_0 : i32, i32
  }
  func.func @transform_4(%arg0: i32) -> (i32, i32) {
    %c0_i32 = arith.constant 0 : i32
    %c0_i32_0 = arith.constant 0 : i32
    %c0_i32_1 = arith.constant 0 : i32
    return %c0_i32, %c0_i32_0 : i32, i32
  }
  func.func @transform_5(%arg0: i32) -> (i32, i32) {
    %c0_i32 = arith.constant 0 : i32
    %c0_i32_0 = arith.constant 0 : i32
    %c0_i32_1 = arith.constant 0 : i32
    return %c0_i32, %c0_i32_0 : i32, i32
  }
  func.func @transform_6(%arg0: i32) -> (i32, i32) {
    %c0_i32 = arith.constant 0 : i32
    %c0_i32_0 = arith.constant 0 : i32
    %c0_i32_1 = arith.constant 0 : i32
    return %c0_i32, %c0_i32_0 : i32, i32
  }
  func.func @transform_7(%arg0: i32) -> (i32, i32) {
    %c0_i32 = arith.constant 0 : i32
    %c0_i32_0 = arith.constant 0 : i32
    %c0_i32_1 = arith.constant 0 : i32
    return %c0_i32, %c0_i32_0 : i32, i32
  }
  func.func @transform_8(%arg0: i32) -> (i32, i32) {
    %c0_i32 = arith.constant 0 : i32
    %c0_i32_0 = arith.constant 0 : i32
    %c0_i32_1 = arith.constant 0 : i32
    return %c0_i32, %c0_i32_0 : i32, i32
  }
  func.func @transform_9(%arg0: i32) -> (i32, i32) {
    %c0_i32 = arith.constant 0 : i32
    %c0_i32_0 = arith.constant 0 : i32
    return %c0_i32, %arg0 : i32, i32
  }
}

</mosaic_0001>

<llo_original>
// kernel: tpu_custom_call.1
$region0: #{tpu_custom_call.1}
  #allocation0 [shape = 'u32[]', space=smem, size = 0x4, offset = 0x4, fixed_abs, tag = 'smem constant byte address 0x4 - core index']
  #allocation1 [shape = 'u32[144,128]{1,0:T(1,128)}', space=vmem, size = 0x12000, scoped, tag = 'internal scratch']
  %s0 = inlined_call_operand.vmem [shape: f32[4,64], index: 0, kind: input, shape index: {}]
  %s1 = inlined_call_operand.vmem [shape: f32[4,4], index: 1, kind: input, shape index: {}]
  %s2 = inlined_call_operand.vmem [shape: f32[4,1], index: 2, kind: input, shape index: {}]
  %s3 = inlined_call_operand.vmem [shape: f32[32,4], index: 3, kind: input, shape index: {}]
  %s4 = inlined_call_operand.vmem [shape: f32[32,1], index: 4, kind: input, shape index: {}]
  %s5 = inlined_call_operand.vmem [shape: f32[32,32], index: 5, kind: input, shape index: {}]
  %s6 = inlined_call_operand.vmem [shape: f32[32,1], index: 6, kind: input, shape index: {}]
  %s7 = inlined_call_operand.vmem [shape: f32[2,32], index: 7, kind: input, shape index: {}]
  %s8 = inlined_call_operand.vmem [shape: f32[2,1], index: 8, kind: input, shape index: {}]
  %s9 = inlined_call_operand.hbm [shape: f32[2,64], index: 9, kind: output, shape index: {}]
  %s10 = sld [smem:[#allocation0]]
  $region46: #{tpu_custom_call.1} parent=0
    _
  %s12 = ssub.s32 1, %s10
  %s13 = scalar_select 0, %s12, %s10
  $region1: #{tpu_custom_call.1} parent=0
    #allocation2 [shape = 'u8[1024]{0}', space=vmem, size = 0x400, scoped, tag = 'output window, operand 0, single buffered']
    #allocation3 [shape = 's32[1]{0}', space=sflag, size = 0x4, scoped, tag = 'scoped memory for tpu_custom_call.1']
    %14 = vsyncpa [#allocation3], 0
    // Predicated region
    $region2: #{tpu_custom_call.1} parent=1 // pred_check
      _
    $region3: #{tpu_custom_call.1} parent=1 // pred_check_branch
      %16 = sbr.rel (0) target = $region5
    $region4: #{tpu_custom_call.1} parent=1 // pred_region
      _
    $region5: #{tpu_custom_call.1} parent=1 // pred_fallthru
      _
    // Predicated region
    $region6: #{tpu_custom_call.1} parent=1 // pred_check
      _
    $region7: #{tpu_custom_call.1} parent=1 // pred_check_branch
      %18 = sbr.rel (0) target = $region9
    $region8: #{tpu_custom_call.1} parent=1 // pred_region
      _
    $region9: #{tpu_custom_call.1} parent=1 // pred_fallthru
      _
    // Predicated region
    $region10: #{tpu_custom_call.1} parent=1 // pred_check
      _
    $region11: #{tpu_custom_call.1} parent=1 // pred_check_branch
      %20 = sbr.rel (0) target = $region13
    $region12: #{tpu_custom_call.1} parent=1 // pred_region
      _
    $region13: #{tpu_custom_call.1} parent=1 // pred_fallthru
      _
    // Predicated region
    $region14: #{tpu_custom_call.1} parent=1 // pred_check
      _
    $region15: #{tpu_custom_call.1} parent=1 // pred_check_branch
      %22 = sbr.rel (0) target = $region17
    $region16: #{tpu_custom_call.1} parent=1 // pred_region
      _
    $region17: #{tpu_custom_call.1} parent=1 // pred_fallthru
      _
    // Predicated region
    $region18: #{tpu_custom_call.1} parent=1 // pred_check
      _
    $region19: #{tpu_custom_call.1} parent=1 // pred_check_branch
      %24 = sbr.rel (0) target = $region21
    $region20: #{tpu_custom_call.1} parent=1 // pred_region
      _
    $region21: #{tpu_custom_call.1} parent=1 // pred_fallthru
      _
    // Predicated region
    $region22: #{tpu_custom_call.1} parent=1 // pred_check
      _
    $region23: #{tpu_custom_call.1} parent=1 // pred_check_branch
      %26 = sbr.rel (0) target = $region25
    $region24: #{tpu_custom_call.1} parent=1 // pred_region
      _
    $region25: #{tpu_custom_call.1} parent=1 // pred_fallthru
      _
    // Predicated region
    $region26: #{tpu_custom_call.1} parent=1 // pred_check
      _
    $region27: #{tpu_custom_call.1} parent=1 // pred_check_branch
      %28 = sbr.rel (0) target = $region29
    $region28: #{tpu_custom_call.1} parent=1 // pred_region
      _
    $region29: #{tpu_custom_call.1} parent=1 // pred_fallthru
      _
    // Predicated region
    $region30: #{tpu_custom_call.1} parent=1 // pred_check
      _
    $region31: #{tpu_custom_call.1} parent=1 // pred_check_branch
      %30 = sbr.rel (0) target = $region33
    $region32: #{tpu_custom_call.1} parent=1 // pred_region
      _
    $region33: #{tpu_custom_call.1} parent=1 // pred_fallthru
      _
    // Predicated region
    $region34: #{tpu_custom_call.1} parent=1 // pred_check
      _
    $region35: #{tpu_custom_call.1} parent=1 // pred_check_branch
      %32 = sbr.rel (0) target = $region37
    $region36: #{tpu_custom_call.1} parent=1 // pred_region
      _
    $region37: #{tpu_custom_call.1} parent=1 // pred_fallthru
      _
    %v33 = vld [vmem:[%s0] sm:$0xf]
    %v34 = vld [vmem:[%s1] sm:$0xf]
    %v35 = vld [vmem:[%s2] sm:$0xf]
    %37 = vset.pattern.permute.xlu0 0
    %38 = vperm.xlu0 %37, %v35
    %v39 = vpop.permute.xlu0 %38
    %vm41 = vcmask 31744
    %v43 = vsel %vm41, %v34, 0
    %vm45 = vcmask 1043456
    %v47 = vsel %vm45, %v33, 0
    %49 = vmatprep.subr.mxu0 0.0
    %50 = vmatpush1.msra.mxu0 %v47
    %51 = vmatprep.subr.mxu0 0.0
    %52 = vmatpush1.msra.mxu0 0.0
    %53 = vmatprep.subr.mxu0 0.0
    %54 = vmatpush1.msra.mxu0 0.0
    %55 = vmatprep.subr.mxu0 0.0
    %56 = vmatpush1.msra.mxu0 0.0
    %57 = vmatprep.subr.mxu0 0.0
    %58 = vmatpush1.msra.mxu0 0.0
    %59 = vmatprep.subr.mxu0 0.0
    %60 = vmatpush1.msra.mxu0 0.0
    %61 = vmatprep.subr.mxu0 0.0
    %62 = vmatpush1.msra.mxu0 0.0
    %63 = vmatprep.subr.mxu0 0.0
    %64 = vmatpush1.msra.mxu0 0.0
    %65 = vmatprep.subr.mxu0 0.0
    %66 = vmatpush1.msra.mxu0 0.0
    %67 = vmatprep.subr.mxu0 0.0
    %68 = vmatpush1.msra.mxu0 0.0
    %69 = vmatprep.subr.mxu0 0.0
    %70 = vmatpush1.msra.mxu0 0.0
    %71 = vmatprep.subr.mxu0 0.0
    %72 = vmatpush1.msra.mxu0 0.0
    %73 = vmatprep.subr.mxu0 0.0
    %74 = vmatpush1.msra.mxu0 0.0
    %75 = vmatprep.subr.mxu0 0.0
    %76 = vmatpush1.msra.mxu0 0.0
    %77 = vmatprep.subr.mxu0 0.0
    %78 = vmatpush1.msra.mxu0 0.0
    %79 = vmatprep.subr.mxu0 0.0
    %80 = vmatpush1.msra.mxu0 0.0
    %81 = vmatprep.subr.mxu0 0.0
    %82 = vmatpush1.msra.mxu0 0.0
    %83 = vmatprep.subr.mxu0 0.0
    %84 = vmatpush1.msra.mxu0 0.0
    %85 = vmatprep.subr.mxu0 0.0
    %86 = vmatpush1.msra.mxu0 0.0
    %87 = vmatprep.subr.mxu0 0.0
    %88 = vmatpush1.msra.mxu0 0.0
    %89 = vmatprep.subr.mxu0 0.0
    %90 = vmatpush1.msra.mxu0 0.0
    %91 = vmatprep.subr.mxu0 0.0
    %92 = vmatpush1.msra.mxu0 0.0
    %93 = vmatprep.subr.mxu0 0.0
    %94 = vmatpush1.msra.mxu0 0.0
    %95 = vmatprep.subr.mxu0 0.0
    %96 = vmatpush1.msra.mxu0 0.0
    %97 = vmatprep.subr.mxu0 0.0
    %98 = vmatpush1.msra.mxu0 0.0
    %99 = vmatprep.subr.mxu0 0.0
    %100 = vmatpush1.msra.mxu0 0.0
    %101 = vmatprep.subr.mxu0 0.0
    %102 = vmatpush1.msra.mxu0 0.0
    %103 = vmatprep.subr.mxu0 0.0
    %104 = vmatpush1.msra.mxu0 0.0
    %105 = vmatprep.subr.mxu0 0.0
    %106 = vmatpush1.msra.mxu0 0.0
    %107 = vmatprep.subr.mxu0 0.0
    %108 = vmatpush1.msra.mxu0 0.0
    %109 = vmatprep.subr.mxu0 0.0
    %110 = vmatpush1.msra.mxu0 0.0
    %111 = vmatprep.subr.mxu0 0.0
    %112 = vmatpush1.msra.mxu0 0.0
    %113 = vmatprep.mubr.f32.mxu0 0.0
    %114 = vmatmul.mubr.f32.gmra.mrb[0].mxu0 %v43
    %v115 = vpop.f32.mrb[0].mxu0
    %v116 = vadd.f32 %v39, %v115
    %v117 = vpop.f32.mrb[0].mxu0
    %118 = vdwg.mxu0
    %v119 = vtanh.pop %v116
    %v120 = vld [vmem:[%s3] sm:$0xff]
    %v121 = vld [vmem:[%s3 + $0x8] sm:$0xff]
    %v122 = vld [vmem:[%s3 + $0x10] sm:$0xff]
    %v123 = vld [vmem:[%s3 + $0x18] sm:$0xff]
    %v124 = vld [vmem:[%s4] sm:$0xff]
    %v125 = vld [vmem:[%s4 + $0x8] sm:$0xff]
    %v126 = vld [vmem:[%s4 + $0x10] sm:$0xff]
    %v127 = vld [vmem:[%s4 + $0x18] sm:$0xff]
    %129 = vset.pattern.permute.xlu0 0
    %130 = vperm.xlu0 %129, %v124
    %v131 = vpop.permute.xlu0 %130
    %134 = vset.pattern.permute.xlu0 0
    %135 = vperm.xlu0 %134, %v125
    %v136 = vpop.permute.xlu0 %135
    %139 = vset.pattern.permute.xlu0 0
    %140 = vperm.xlu0 %139, %v126
    %v141 = vpop.permute.xlu0 %140
    %144 = vset.pattern.permute.xlu0 0
    %145 = vperm.xlu0 %144, %v127
    %v146 = vpop.permute.xlu0 %145
    %v149 = vsel %vm41, %v120, 0
    %v152 = vsel %vm41, %v121, 0
    %v155 = vsel %vm41, %v122, 0
    %v158 = vsel %vm41, %v123, 0
    %v161 = vsel %vm45, %v119, 0
    %163 = vmatprep.subr.mxu0 0.0
    %164 = vmatpush1.msra.mxu0 %v161
    %165 = vmatprep.subr.mxu0 0.0
    %166 = vmatpush1.msra.mxu0 0.0
    %167 = vmatprep.subr.mxu0 0.0
    %168 = vmatpush1.msra.mxu0 0.0
    %169 = vmatprep.subr.mxu0 0.0
    %170 = vmatpush1.msra.mxu0 0.0
    %171 = vmatprep.subr.mxu0 0.0
    %172 = vmatpush1.msra.mxu0 0.0
    %173 = vmatprep.subr.mxu0 0.0
    %174 = vmatpush1.msra.mxu0 0.0
    %175 = vmatprep.subr.mxu0 0.0
    %176 = vmatpush1.msra.mxu0 0.0
    %177 = vmatprep.subr.mxu0 0.0
    %178 = vmatpush1.msra.mxu0 0.0
    %179 = vmatprep.subr.mxu0 0.0
    %180 = vmatpush1.msra.mxu0 0.0
    %181 = vmatprep.subr.mxu0 0.0
    %182 = vmatpush1.msra.mxu0 0.0
    %183 = vmatprep.subr.mxu0 0.0
    %184 = vmatpush1.msra.mxu0 0.0
    %185 = vmatprep.subr.mxu0 0.0
    %186 = vmatpush1.msra.mxu0 0.0
    %187 = vmatprep.subr.mxu0 0.0
    %188 = vmatpush1.msra.mxu0 0.0
    %189 = vmatprep.subr.mxu0 0.0
    %190 = vmatpush1.msra.mxu0 0.0
    %191 = vmatprep.subr.mxu0 0.0
    %192 = vmatpush1.msra.mxu0 0.0
    %193 = vmatprep.subr.mxu0 0.0
    %194 = vmatpush1.msra.mxu0 0.0
    %195 = vmatprep.subr.mxu0 0.0
    %196 = vmatpush1.msra.mxu0 0.0
    %197 = vmatprep.subr.mxu0 0.0
    %198 = vmatpush1.msra.mxu0 0.0
    %199 = vmatprep.subr.mxu0 0.0
    %200 = vmatpush1.msra.mxu0 0.0
    %201 = vmatprep.subr.mxu0 0.0
    %202 = vmatpush1.msra.mxu0 0.0
    %203 = vmatprep.subr.mxu0 0.0
    %204 = vmatpush1.msra.mxu0 0.0
    %205 = vmatprep.subr.mxu0 0.0
    %206 = vmatpush1.msra.mxu0 0.0
    %207 = vmatprep.subr.mxu0 0.0
    %208 = vmatpush1.msra.mxu0 0.0
    %209 = vmatprep.subr.mxu0 0.0
    %210 = vmatpush1.msra.mxu0 0.0
    %211 = vmatprep.subr.mxu0 0.0
    %212 = vmatpush1.msra.mxu0 0.0
    %213 = vmatprep.subr.mxu0 0.0
    %214 = vmatpush1.msra.mxu0 0.0
    %215 = vmatprep.subr.mxu0 0.0
    %216 = vmatpush1.msra.mxu0 0.0
    %217 = vmatprep.subr.mxu0 0.0
    %218 = vmatpush1.msra.mxu0 0.0
    %219 = vmatprep.subr.mxu0 0.0
    %220 = vmatpush1.msra.mxu0 0.0
    %221 = vmatprep.subr.mxu0 0.0
    %222 = vmatpush1.msra.mxu0 0.0
    %223 = vmatprep.subr.mxu0 0.0
    %224 = vmatpush1.msra.mxu0 0.0
    %225 = vmatprep.subr.mxu0 0.0
    %226 = vmatpush1.msra.mxu0 0.0
    %227 = vmatprep.mubr.f32.mxu0 0.0
    %228 = vmatmul.mubr.f32.gmra.mrb[0].mxu0 %v149
    %v229 = vpop.f32.mrb[0].mxu0
    %v230 = vadd.f32 %v131, %v229
    %v231 = vpop.f32.mrb[0].mxu0
    %232 = vmatprep.mubr.f32.mxu0 0.0
    %233 = vmatmul.mubr.f32.gmra.mrb[0].mxu0 %v152
    %v234 = vpop.f32.mrb[0].mxu0
    %v235 = vadd.f32 %v136, %v234
    %v236 = vpop.f32.mrb[0].mxu0
    %237 = vmatprep.mubr.f32.mxu0 0.0
    %238 = vmatmul.mubr.f32.gmra.mrb[0].mxu0 %v155
    %v239 = vpop.f32.mrb[0].mxu0
    %v240 = vadd.f32 %v141, %v239
    %v241 = vpop.f32.mrb[0].mxu0
    %242 = vmatprep.mubr.f32.mxu0 0.0
    %243 = vmatmul.mubr.f32.gmra.mrb[0].mxu0 %v158
    %v244 = vpop.f32.mrb[0].mxu0
    %v245 = vadd.f32 %v146, %v244
    %v246 = vpop.f32.mrb[0].mxu0
    %247 = vdwg.mxu0
    %v248 = vtanh.pop %v230
    %v249 = vtanh.pop %v235
    %v250 = vtanh.pop %v240
    %v251 = vtanh.pop %v245
    %v252 = vld [vmem:[%s5] sm:$0xff]
    %v253 = vld [vmem:[%s5 + $0x8] sm:$0xff]
    %v254 = vld [vmem:[%s5 + $0x10] sm:$0xff]
    %v255 = vld [vmem:[%s5 + $0x18] sm:$0xff]
    %v256 = vld [vmem:[%s6] sm:$0xff]
    %v257 = vld [vmem:[%s6 + $0x8] sm:$0xff]
    %v258 = vld [vmem:[%s6 + $0x10] sm:$0xff]
    %v259 = vld [vmem:[%s6 + $0x18] sm:$0xff]
    %261 = vset.pattern.permute.xlu0 0
    %262 = vperm.xlu0 %261, %v256
    %v263 = vpop.permute.xlu0 %262
    %266 = vset.pattern.permute.xlu0 0
    %267 = vperm.xlu0 %266, %v257
    %v268 = vpop.permute.xlu0 %267
    %271 = vset.pattern.permute.xlu0 0
    %272 = vperm.xlu0 %271, %v258
    %v273 = vpop.permute.xlu0 %272
    %276 = vset.pattern.permute.xlu0 0
    %277 = vperm.xlu0 %276, %v259
    %v278 = vpop.permute.xlu0 %277
    %vm280 = vcmask 261120
    %v282 = vsel %vm280, %v252, 0
    %v285 = vsel %vm280, %v253, 0
    %v288 = vsel %vm280, %v254, 0
    %v291 = vsel %vm280, %v255, 0
    %293 = vmatprep.subr.mxu0 0.0
    %294 = vmatpush1.msra.mxu0 %v248
    %295 = vmatprep.subr.mxu0 0.0
    %296 = vmatpush1.msra.mxu0 %v249
    %297 = vmatprep.subr.mxu0 0.0
    %298 = vmatpush1.msra.mxu0 %v250
    %299 = vmatprep.subr.mxu0 0.0
    %300 = vmatpush1.msra.mxu0 %v251
    %301 = vmatprep.subr.mxu0 0.0
    %302 = vmatpush1.msra.mxu0 0.0
    %303 = vmatprep.subr.mxu0 0.0
    %304 = vmatpush1.msra.mxu0 0.0
    %305 = vmatprep.subr.mxu0 0.0
    %306 = vmatpush1.msra.mxu0 0.0
    %307 = vmatprep.subr.mxu0 0.0
    %308 = vmatpush1.msra.mxu0 0.0
    %309 = vmatprep.subr.mxu0 0.0
    %310 = vmatpush1.msra.mxu0 0.0
    %311 = vmatprep.subr.mxu0 0.0
    %312 = vmatpush1.msra.mxu0 0.0
    %313 = vmatprep.subr.mxu0 0.0
    %314 = vmatpush1.msra.mxu0 0.0
    %315 = vmatprep.subr.mxu0 0.0
    %316 = vmatpush1.msra.mxu0 0.0
    %317 = vmatprep.subr.mxu0 0.0
    %318 = vmatpush1.msra.mxu0 0.0
    %319 = vmatprep.subr.mxu0 0.0
    %320 = vmatpush1.msra.mxu0 0.0
    %321 = vmatprep.subr.mxu0 0.0
    %322 = vmatpush1.msra.mxu0 0.0
    %323 = vmatprep.subr.mxu0 0.0
    %324 = vmatpush1.msra.mxu0 0.0
    %325 = vmatprep.subr.mxu0 0.0
    %326 = vmatpush1.msra.mxu0 0.0
    %327 = vmatprep.subr.mxu0 0.0
    %328 = vmatpush1.msra.mxu0 0.0
    %329 = vmatprep.subr.mxu0 0.0
    %330 = vmatpush1.msra.mxu0 0.0
    %331 = vmatprep.subr.mxu0 0.0
    %332 = vmatpush1.msra.mxu0 0.0
    %333 = vmatprep.subr.mxu0 0.0
    %334 = vmatpush1.msra.mxu0 0.0
    %335 = vmatprep.subr.mxu0 0.0
    %336 = vmatpush1.msra.mxu0 0.0
    %337 = vmatprep.subr.mxu0 0.0
    %338 = vmatpush1.msra.mxu0 0.0
    %339 = vmatprep.subr.mxu0 0.0
    %340 = vmatpush1.msra.mxu0 0.0
    %341 = vmatprep.subr.mxu0 0.0
    %342 = vmatpush1.msra.mxu0 0.0
    %343 = vmatprep.subr.mxu0 0.0
    %344 = vmatpush1.msra.mxu0 0.0
    %345 = vmatprep.subr.mxu0 0.0
    %346 = vmatpush1.msra.mxu0 0.0
    %347 = vmatprep.subr.mxu0 0.0
    %348 = vmatpush1.msra.mxu0 0.0
    %349 = vmatprep.subr.mxu0 0.0
    %350 = vmatpush1.msra.mxu0 0.0
    %351 = vmatprep.subr.mxu0 0.0
    %352 = vmatpush1.msra.mxu0 0.0
    %353 = vmatprep.subr.mxu0 0.0
    %354 = vmatpush1.msra.mxu0 0.0
    %355 = vmatprep.subr.mxu0 0.0
    %356 = vmatpush1.msra.mxu0 0.0
    %357 = vmatprep.mubr.f32.mxu0 0.0
    %358 = vmatmul.mubr.f32.gmra.mrb[0].mxu0 %v282
    %v359 = vpop.f32.mrb[0].mxu0
    %v360 = vadd.f32 %v263, %v359
    %v361 = vpop.f32.mrb[0].mxu0
    %362 = vmatprep.mubr.f32.mxu0 0.0
    %363 = vmatmul.mubr.f32.gmra.mrb[0].mxu0 %v285
    %v364 = vpop.f32.mrb[0].mxu0
    %v365 = vadd.f32 %v268, %v364
    %v366 = vpop.f32.mrb[0].mxu0
    %367 = vmatprep.mubr.f32.mxu0 0.0
    %368 = vmatmul.mubr.f32.gmra.mrb[0].mxu0 %v288
    %v369 = vpop.f32.mrb[0].mxu0
    %v370 = vadd.f32 %v273, %v369
    %v371 = vpop.f32.mrb[0].mxu0
    %372 = vmatprep.mubr.f32.mxu0 0.0
    %373 = vmatmul.mubr.f32.gmra.mrb[0].mxu0 %v291
    %v374 = vpop.f32.mrb[0].mxu0
    %v375 = vadd.f32 %v278, %v374
    %v376 = vpop.f32.mrb[0].mxu0
    %377 = vdwg.mxu0
    %v378 = vtanh.pop %v360
    %v379 = vtanh.pop %v365
    %v380 = vtanh.pop %v370
    %v381 = vtanh.pop %v375
    %v382 = vld [vmem:[%s7] sm:$0x3]
    %v383 = vld [vmem:[%s8] sm:$0x3]
    %385 = vset.pattern.permute.xlu0 0
    %386 = vperm.xlu0 %385, %v383
    %v387 = vpop.permute.xlu0 %386
    %v390 = vsel %vm280, %v382, 0
    %392 = vmatprep.subr.mxu0 0.0
    %393 = vmatpush1.msra.mxu0 %v378
    %394 = vmatprep.subr.mxu0 0.0
    %395 = vmatpush1.msra.mxu0 %v379
    %396 = vmatprep.subr.mxu0 0.0
    %397 = vmatpush1.msra.mxu0 %v380
    %398 = vmatprep.subr.mxu0 0.0
    %399 = vmatpush1.msra.mxu0 %v381
    %400 = vmatprep.subr.mxu0 0.0
    %401 = vmatpush1.msra.mxu0 0.0
    %402 = vmatprep.subr.mxu0 0.0
    %403 = vmatpush1.msra.mxu0 0.0
    %404 = vmatprep.subr.mxu0 0.0
    %405 = vmatpush1.msra.mxu0 0.0
    %406 = vmatprep.subr.mxu0 0.0
    %407 = vmatpush1.msra.mxu0 0.0
    %408 = vmatprep.subr.mxu0 0.0
    %409 = vmatpush1.msra.mxu0 0.0
    %410 = vmatprep.subr.mxu0 0.0
    %411 = vmatpush1.msra.mxu0 0.0
    %412 = vmatprep.subr.mxu0 0.0
    %413 = vmatpush1.msra.mxu0 0.0
    %414 = vmatprep.subr.mxu0 0.0
    %415 = vmatpush1.msra.mxu0 0.0
    %416 = vmatprep.subr.mxu0 0.0
    %417 = vmatpush1.msra.mxu0 0.0
    %418 = vmatprep.subr.mxu0 0.0
    %419 = vmatpush1.msra.mxu0 0.0
    %420 = vmatprep.subr.mxu0 0.0
    %421 = vmatpush1.msra.mxu0 0.0
    %422 = vmatprep.subr.mxu0 0.0
    %423 = vmatpush1.msra.mxu0 0.0
    %424 = vmatprep.subr.mxu0 0.0
    %425 = vmatpush1.msra.mxu0 0.0
    %426 = vmatprep.subr.mxu0 0.0
    %427 = vmatpush1.msra.mxu0 0.0
    %428 = vmatprep.subr.mxu0 0.0
    %429 = vmatpush1.msra.mxu0 0.0
    %430 = vmatprep.subr.mxu0 0.0
    %431 = vmatpush1.msra.mxu0 0.0
    %432 = vmatprep.subr.mxu0 0.0
    %433 = vmatpush1.msra.mxu0 0.0
    %434 = vmatprep.subr.mxu0 0.0
    %435 = vmatpush1.msra.mxu0 0.0
    %436 = vmatprep.subr.mxu0 0.0
    %437 = vmatpush1.msra.mxu0 0.0
    %438 = vmatprep.subr.mxu0 0.0
    %439 = vmatpush1.msra.mxu0 0.0
    %440 = vmatprep.subr.mxu0 0.0
    %441 = vmatpush1.msra.mxu0 0.0
    %442 = vmatprep.subr.mxu0 0.0
    %443 = vmatpush1.msra.mxu0 0.0
    %444 = vmatprep.subr.mxu0 0.0
    %445 = vmatpush1.msra.mxu0 0.0
    %446 = vmatprep.subr.mxu0 0.0
    %447 = vmatpush1.msra.mxu0 0.0
    %448 = vmatprep.subr.mxu0 0.0
    %449 = vmatpush1.msra.mxu0 0.0
    %450 = vmatprep.subr.mxu0 0.0
    %451 = vmatpush1.msra.mxu0 0.0
    %452 = vmatprep.subr.mxu0 0.0
    %453 = vmatpush1.msra.mxu0 0.0
    %454 = vmatprep.subr.mxu0 0.0
    %455 = vmatpush1.msra.mxu0 0.0
    %456 = vmatprep.mubr.f32.mxu0 0.0
    %457 = vmatmul.mubr.f32.gmra.mrb[0].mxu0 %v390
    %v458 = vpop.f32.mrb[0].mxu0
    %v459 = vadd.f32 %v387, %v458
    %v460 = vpop.f32.mrb[0].mxu0
    %461 = vdwg.mxu0
    %462 = vst [vmem:[#allocation2] sm:$0x3] %v459
    // Predicated region
    $region38: #{tpu_custom_call.1} parent=1 // pred_check
      _
    $region39: #{tpu_custom_call.1} parent=1 // pred_check_branch
      %464 = sbr.rel (0) target = $region41
    $region40: #{tpu_custom_call.1} parent=1 // pred_region
      %s466 = ssub.s32 32, 32
      %467 = vsyncadd [#allocation3], %s466
      %s469 = sshll.u32 [#allocation2], 4
      %s470 = int_to_ptr.vmem [resolvable:$true] %s469
      %472 = dma.vmem_to_hbm [thread:$0]  %s470, 32, %s9, [#allocation3]
    $region41: #{tpu_custom_call.1} parent=1 // pred_fallthru
      _
    // Predicated region
    $region42: #{tpu_custom_call.1} parent=1 // pred_check
      _
    $region43: #{tpu_custom_call.1} parent=1 // pred_check_branch
      %474 = sbr.rel (0) target = $region45
    $region44: #{tpu_custom_call.1} parent=1 // pred_region
      %475 = dma.done [#allocation3], 32
    $region45: #{tpu_custom_call.1} parent=1 // pred_fallthru
      _
    %476 = vsyncpa [#allocation3], 1

</llo_original>
